<compile_context>
chip_gen: v5e
topology: v5e:2x2
jax: 0.10.0
libtpu: 0.0.40
codegen_flags: <defaults>
</compile_context>

<pallas_src>
import functools

import jax
import jax.numpy as jnp
import numpy as np
from jax.experimental import pallas as pl
from jax.experimental.pallas import tpu as pltpu


def _keep_threshold_u32(dropout):
    """uint32 threshold t so that P(uniform_u32 < t) == keep == 1 - dropout."""
    keep = 1.0 - float(dropout)
    return min(int(round(keep * 4294967296.0)), 4294967295)


def weight_drop_lstm_kernel(x_ref, w_ih_ref, w_hh_raw_ref, bits_ref, b_ref,
                            out_ref, whh_scr, h_scr, c_scr,
                            *, hidden_size, batch, tile_t, dropout, training):
    """One grid step = TILE_T LSTM timesteps.

    At grid step 0 the weight-drop mask is applied to the raw hidden-to-hidden
    weight (mask sampled once per forward, as in PyTorch) and the dropped
    weight is cached in VMEM scratch (bf16) for the whole sequence.  Each grid
    step does one big input-projection GEMM for its chunk, then a statically
    unrolled per-timestep recurrence that only contains the small h @ W_hh
    matmul and elementwise gate math.
    """
    H = hidden_size
    B = batch
    chunk = pl.program_id(0)

    @pl.when(chunk == 0)
    def _init():
        raw = w_hh_raw_ref[...]                         # (H, 4H) f32
        if training and dropout > 0.0:
            keep = 1.0 - dropout
            thresh = jnp.uint32(_keep_threshold_u32(dropout))
            # integer compare: keep element iff bits < keep * 2^32
            mask = bits_ref[...] < thresh
            dropped = jnp.where(mask, raw * (1.0 / keep), 0.0)
        else:
            # F.dropout(training=False) is the identity
            dropped = raw
        whh_scr[...] = dropped.astype(whh_scr.dtype)    # bf16 MXU operand
        h_scr[...] = jnp.zeros_like(h_scr)
        c_scr[...] = jnp.zeros_like(c_scr)

    # ---- input projection for the whole chunk: one GEMM, M = TILE_T * B ----
    x_chunk = x_ref[...].astype(jnp.bfloat16)           # (TILE_T, B, I)
    zx = jnp.dot(x_chunk.reshape(tile_t * B, -1), w_ih_ref[...],
                 preferred_element_type=jnp.float32)    # (TILE_T*B, 4H) f32
    zx = zx + b_ref[...]                                # broadcast (1, 4H) bias

    whh = whh_scr[...]                                  # (H, 4H) bf16, hoisted
    h = h_scr[...]                                      # (B, H) f32 carry
    c = c_scr[...]

    # ---- serial recurrence, statically unrolled: all indices compile-time ----
    for t in range(tile_t):
        z = zx[t * B:(t + 1) * B, :]                    # static slice (B, 4H)
        z = z + jnp.dot(h.astype(jnp.bfloat16), whh,
                        preferred_element_type=jnp.float32)
        # PyTorch gate order i, f, g, o along the 4H lane axis.
        i_g = jax.nn.sigmoid(z[:, 0 * H:1 * H])
        f_g = jax.nn.sigmoid(z[:, 1 * H:2 * H])
        g_g = jnp.tanh(z[:, 2 * H:3 * H])
        o_g = jax.nn.sigmoid(z[:, 3 * H:4 * H])
        c = f_g * c + i_g * g_g
        h = o_g * jnp.tanh(c)
        out_ref[t] = h.astype(out_ref.dtype)            # static index store

    # spill the carry once per chunk (crosses the grid-step boundary)
    h_scr[...] = h
    c_scr[...] = c


def weight_drop_lstm(x, weight_ih, weight_hh_raw, bias_ih, bias_hh, seed,
                     *, dropout=0.5, training=True, tile_t=8):
    """WeightDrop(LSTM(I, H), ['weight_hh_l0'], dropout).forward(x).

    x:              (T, B, I) float32
    weight_ih:      (4H, I)   float32   (not dropped)
    weight_hh_raw:  (4H, H)   float32   (the `weight_hh_l0_raw` parameter)
    bias_ih/bias_hh:(4H,)     float32
    Returns the LSTM output sequence (T, B, H) float32.
    """
    T, B, I = x.shape
    four_h = weight_ih.shape[0]
    H = four_h // 4
    tile_t = min(tile_t, T)
    assert T % tile_t == 0, "T must be divisible by tile_t"

    # glue: transpose weights so the 4H gate axis is the lane dimension.
    w_ih_t = weight_ih.T.astype(jnp.bfloat16)            # (I, 4H) bf16
    w_hh_t = weight_hh_raw.T.astype(jnp.float32)         # (H, 4H) raw f32
    b = (bias_ih + bias_hh).reshape(1, four_h).astype(jnp.float32)
    # Weight-drop mask bits: sampled once per forward call (matches PyTorch,
    # where F.dropout samples one mask per forward).
    # TODO(synk): PyTorch's exact dropout RNG stream is not reproducible here;
    # the mask comes from jax.random bits seeded deterministically instead.
    bits = jax.random.bits(jax.random.PRNGKey(seed), (H, four_h),
                           dtype=jnp.uint32)

    kernel = functools.partial(
        weight_drop_lstm_kernel, hidden_size=H, batch=B, tile_t=tile_t,
        dropout=float(dropout), training=bool(training))

    # TODO(synk): for large H (AWD-LSTM scale), move w_hh_t to
    # memory_space=pl.ANY with a one-shot DMA at chunk==0 and tile the 4H gate
    # axis so the persistent weight fits v7x's 64 MiB VMEM.
    return pl.pallas_call(
        kernel,
        out_shape=jax.ShapeDtypeStruct((T, B, H), jnp.float32),
        grid_spec=pltpu.PrefetchScalarGridSpec(
            num_scalar_prefetch=0,
            grid=(T // tile_t,),
            in_specs=[
                pl.BlockSpec((tile_t, B, I), lambda c: (c, 0, 0)),   # x chunk
                pl.BlockSpec((I, four_h), lambda c: (0, 0)),          # W_ih^T
                pl.BlockSpec((H, four_h), lambda c: (0, 0)),          # W_hh_raw^T
                pl.BlockSpec((H, four_h), lambda c: (0, 0)),          # mask bits
                pl.BlockSpec((1, four_h), lambda c: (0, 0)),          # bias
            ],
            out_specs=pl.BlockSpec((tile_t, B, H), lambda c: (c, 0, 0)),
            scratch_shapes=[
                pltpu.VMEM((H, four_h), jnp.bfloat16),  # dropped W_hh (persists)
                pltpu.VMEM((B, H), jnp.float32),        # h carry
                pltpu.VMEM((B, H), jnp.float32),        # c carry
            ],
        ),
        compiler_params=pltpu.CompilerParams(
            # Recurrence: the time-chunk axis carries state in scratch, so it
            # must stay "arbitrary" (never mark it "parallel").
            dimension_semantics=("arbitrary",)),
    )(x, w_ih_t, w_hh_t, bits, b)


def lstm_ref(x, weight_ih, weight_hh, bias_ih, bias_hh):
    """Pure-JAX reference with the same bf16-operand / f32-accumulate matmul
    numerics as the kernel (eval-mode WeightDrop == plain LSTM)."""
    T, B, _ = x.shape
    H = weight_hh.shape[1]
    wih_b = weight_ih.astype(jnp.bfloat16)
    whh_b = weight_hh.astype(jnp.bfloat16)
    bias = (bias_ih + bias_hh).astype(jnp.float32)
    h = jnp.zeros((B, H), jnp.float32)
    c = jnp.zeros((B, H), jnp.float32)
    outs = []
    for t in range(T):
        z = (jnp.dot(x[t].astype(jnp.bfloat16), wih_b.T,
                     preferred_element_type=jnp.float32)
             + jnp.dot(h.astype(jnp.bfloat16), whh_b.T,
                       preferred_element_type=jnp.float32)
             + bias)
        i_g = jax.nn.sigmoid(z[:, :H])
        f_g = jax.nn.sigmoid(z[:, H:2 * H])
        g_g = jnp.tanh(z[:, 2 * H:3 * H])
        o_g = jax.nn.sigmoid(z[:, 3 * H:])
        c = f_g * c + i_g * g_g
        h = o_g * jnp.tanh(c)
        outs.append(h)
    return jnp.stack(outs)


if __name__ == "__main__":
    T, B, I, H = 8, 2, 32, 32          # seq=8, batch=2, input=32, hidden=32
    dropout = 0.5
    seed = 42

    key = jax.random.PRNGKey(0)
    kx, k1, k2, k3, k4 = jax.random.split(key, 5)
    bound = 1.0 / np.sqrt(H)           # PyTorch LSTM init U(-1/sqrt(H), 1/sqrt(H))
    x = jax.random.normal(kx, (T, B, I), jnp.float32)
    weight_ih = jax.random.uniform(k1, (4 * H, I), jnp.float32, -bound, bound)
    weight_hh_raw = jax.random.uniform(k2, (4 * H, H), jnp.float32, -bound, bound)
    bias_ih = jax.random.uniform(k3, (4 * H,), jnp.float32, -bound, bound)
    bias_hh = jax.random.uniform(k4, (4 * H,), jnp.float32, -bound, bound)

    # Eval mode: F.dropout(training=False) is identity -> must match plain LSTM.
    out_eval = weight_drop_lstm(x, weight_ih, weight_hh_raw, bias_ih, bias_hh,
                                seed=seed, dropout=dropout, training=False)
    out_eval = jax.block_until_ready(out_eval)
    ref_eval = lstm_ref(x, weight_ih, weight_hh_raw, bias_ih, bias_hh)
    np.testing.assert_allclose(np.asarray(out_eval), np.asarray(ref_eval),
                               rtol=1e-3, atol=1e-3)

    # Train mode: the kernel masks W_hh in place.  Reproduce the mask outside
    # the kernel and check against an LSTM run on the dropped weight.
    out_train = weight_drop_lstm(x, weight_ih, weight_hh_raw, bias_ih, bias_hh,
                                 seed=seed, dropout=dropout, training=True)
    out_train = jax.block_until_ready(out_train)
    keep = 1.0 - dropout
    bits = jax.random.bits(jax.random.PRNGKey(seed), (H, 4 * H),
                           dtype=jnp.uint32)
    mask_t = bits < jnp.uint32(_keep_threshold_u32(dropout))   # mask of W_hh^T
    w_hh_dropped = jnp.where(mask_t.T, weight_hh_raw * (1.0 / keep), 0.0)
    ref_train = lstm_ref(x, weight_ih, w_hh_dropped, bias_ih, bias_hh)
    np.testing.assert_allclose(np.asarray(out_train), np.asarray(ref_train),
                               rtol=1e-3, atol=1e-3)
    assert np.isfinite(np.asarray(out_train)).all()

    print("KERNEL_OK")
</pallas_src>

<mosaic_0001>
module attributes {stable_mosaic.version = 11 : i64} {
  func.func @weight_drop_lstm_kernel(%arg0: i32, %arg1: memref<8x2x32xf32, #tpu.memory_space<vmem>>, %arg2: memref<32x128xbf16, #tpu.memory_space<vmem>>, %arg3: memref<32x128xf32, #tpu.memory_space<vmem>>, %arg4: memref<32x128xi32, #tpu.memory_space<vmem>>, %arg5: memref<1x128xf32, #tpu.memory_space<vmem>>, %arg6: memref<8x2x32xf32, #tpu.memory_space<vmem>>, %arg7: memref<32x128xbf16, #tpu.memory_space<vmem>>, %arg8: memref<2x32xf32, #tpu.memory_space<vmem>>, %arg9: memref<2x32xf32, #tpu.memory_space<vmem>>) attributes {dimension_semantics = [#tpu.dimension_semantics<arbitrary>], iteration_bounds = array<i64: 1>, scalar_prefetch = 0 : i64, scratch_operands = 3 : i64, tpu.core_type = #tpu.core_type<tc>, window_params = [{transform_indices = @transform_0, window_bounds = array<i64: 8, 2, 32>}, {pipeline_mode = #tpu.pipeline_mode<synchronous>, transform_indices = @transform_1, window_bounds = array<i64: 32, 128>}, {pipeline_mode = #tpu.pipeline_mode<synchronous>, transform_indices = @transform_2, window_bounds = array<i64: 32, 128>}, {pipeline_mode = #tpu.pipeline_mode<synchronous>, transform_indices = @transform_3, window_bounds = array<i64: 32, 128>}, {pipeline_mode = #tpu.pipeline_mode<synchronous>, transform_indices = @transform_4, window_bounds = array<i64: 1, 128>}, {transform_indices = @transform_5, window_bounds = array<i64: 8, 2, 32>}]} {
    %c0_i32 = arith.constant 0 : i32
    %0 = arith.cmpi eq, %arg0, %c0_i32 : i32
    %1 = arith.extui %0 : i1 to i32
    %c0_i32_0 = arith.constant 0 : i32
    %2 = arith.cmpi ne, %1, %c0_i32_0 : i32
    scf.if %2 {
      %c0_66 = arith.constant 0 : index
      %c0_67 = arith.constant 0 : index
      %272 = vector.load %arg3[%c0_66, %c0_67] : memref<32x128xf32, #tpu.memory_space<vmem>>, vector<32x128xf32>
      %273 = arith.truncf %272 : vector<32x128xf32> to vector<32x128xbf16>
      %c0_68 = arith.constant 0 : index
      %c0_69 = arith.constant 0 : index
      %274 = vector.load %arg7[%c0_68, %c0_69] : memref<32x128xbf16, #tpu.memory_space<vmem>>, vector<32x128xbf16>
      tpu.vector_store %arg7[%c0_68, %c0_69], %273 {strides = array<i32>} : memref<32x128xbf16, #tpu.memory_space<vmem>>, vector<32x128xbf16>,
      %cst_70 = arith.constant 0.000000e+00 : f32
      %275 = vector.broadcast %cst_70 : f32 to vector<2x32xf32>
      %c0_71 = arith.constant 0 : index
      %c0_72 = arith.constant 0 : index
      %276 = vector.load %arg8[%c0_71, %c0_72] : memref<2x32xf32, #tpu.memory_space<vmem>>, vector<2x32xf32>
      tpu.vector_store %arg8[%c0_71, %c0_72], %275 {strides = array<i32>} : memref<2x32xf32, #tpu.memory_space<vmem>>, vector<2x32xf32>,
      %cst_73 = arith.constant 0.000000e+00 : f32
      %277 = vector.broadcast %cst_73 : f32 to vector<2x32xf32>
      %c0_74 = arith.constant 0 : index
      %c0_75 = arith.constant 0 : index
      %278 = vector.load %arg9[%c0_74, %c0_75] : memref<2x32xf32, #tpu.memory_space<vmem>>, vector<2x32xf32>
      tpu.vector_store %arg9[%c0_74, %c0_75], %277 {strides = array<i32>} : memref<2x32xf32, #tpu.memory_space<vmem>>, vector<2x32xf32>,
    } else {
    }
    %c0 = arith.constant 0 : index
    %c0_1 = arith.constant 0 : index
    %c0_2 = arith.constant 0 : index
    %3 = vector.load %arg1[%c0, %c0_1, %c0_2] : memref<8x2x32xf32, #tpu.memory_space<vmem>>, vector<8x2x32xf32>
    %4 = arith.truncf %3 : vector<8x2x32xf32> to vector<8x2x32xbf16>
    %5 = vector.shape_cast %4 : vector<8x2x32xbf16> to vector<16x32xbf16>
    %c0_3 = arith.constant 0 : index
    %c0_4 = arith.constant 0 : index
    %6 = vector.load %arg2[%c0_3, %c0_4] : memref<32x128xbf16, #tpu.memory_space<vmem>>, vector<32x128xbf16>
    %cst = arith.constant dense<0.000000e+00> : vector<16x128xf32>
    %7 = tpu.matmul %5, %6, %cst {dimension_numbers = #tpu.dot_dimension_numbers<[1], [0], [0], [1], [0, 0, 1, 1], [], []>} : vector<16x32xbf16>, vector<32x128xbf16>, vector<16x128xf32> -> vector<16x128xf32>
    %c0_5 = arith.constant 0 : index
    %c0_6 = arith.constant 0 : index
    %8 = vector.load %arg5[%c0_5, %c0_6] : memref<1x128xf32, #tpu.memory_space<vmem>>, vector<1x128xf32>
    %9 = vector.broadcast %8 : vector<1x128xf32> to vector<16x128xf32>
    %10 = arith.addf %7, %9 : vector<16x128xf32>
    %c0_7 = arith.constant 0 : index
    %c0_8 = arith.constant 0 : index
    %11 = vector.load %arg7[%c0_7, %c0_8] : memref<32x128xbf16, #tpu.memory_space<vmem>>, vector<32x128xbf16>
    %c0_9 = arith.constant 0 : index
    %c0_10 = arith.constant 0 : index
    %12 = vector.load %arg8[%c0_9, %c0_10] : memref<2x32xf32, #tpu.memory_space<vmem>>, vector<2x32xf32>
    %c0_11 = arith.constant 0 : index
    %c0_12 = arith.constant 0 : index
    %13 = vector.load %arg9[%c0_11, %c0_12] : memref<2x32xf32, #tpu.memory_space<vmem>>, vector<2x32xf32>
    %14 = vector.extract_strided_slice %10 {offsets = [0, 0], sizes = [2, 128], strides = [1, 1]} : vector<16x128xf32> to vector<2x128xf32>
    %15 = arith.truncf %12 : vector<2x32xf32> to vector<2x32xbf16>
    %cst_13 = arith.constant dense<0.000000e+00> : vector<2x128xf32>
    %16 = tpu.matmul %15, %11, %cst_13 {dimension_numbers = #tpu.dot_dimension_numbers<[1], [0], [0], [1], [0, 0, 1, 1], [], []>} : vector<2x32xbf16>, vector<32x128xbf16>, vector<2x128xf32> -> vector<2x128xf32>
    %17 = arith.addf %14, %16 : vector<2x128xf32>
    %18 = vector.extract_strided_slice %17 {offsets = [0, 0], sizes = [2, 32], strides = [1, 1]} : vector<2x128xf32> to vector<2x32xf32>
    %19 = arith.negf %18 : vector<2x32xf32>
    %20 = math.exp %19 : vector<2x32xf32>
    %cst_14 = arith.constant 1.000000e+00 : f32
    %21 = vector.broadcast %cst_14 : f32 to vector<2x32xf32>
    %22 = arith.addf %21, %20 : vector<2x32xf32>
    %23 = arith.divf %21, %22 : vector<2x32xf32>
    %24 = vector.extract_strided_slice %17 {offsets = [0, 32], sizes = [2, 32], strides = [1, 1]} : vector<2x128xf32> to vector<2x32xf32>
    %25 = arith.negf %24 : vector<2x32xf32>
    %26 = math.exp %25 : vector<2x32xf32>
    %cst_15 = arith.constant 1.000000e+00 : f32
    %27 = vector.broadcast %cst_15 : f32 to vector<2x32xf32>
    %28 = arith.addf %27, %26 : vector<2x32xf32>
    %29 = arith.divf %27, %28 : vector<2x32xf32>
    %30 = vector.extract_strided_slice %17 {offsets = [0, 64], sizes = [2, 32], strides = [1, 1]} : vector<2x128xf32> to vector<2x32xf32>
    %31 = math.tanh %30 : vector<2x32xf32>
    %32 = vector.extract_strided_slice %17 {offsets = [0, 96], sizes = [2, 32], strides = [1, 1]} : vector<2x128xf32> to vector<2x32xf32>
    %33 = arith.negf %32 : vector<2x32xf32>
    %34 = math.exp %33 : vector<2x32xf32>
    %cst_16 = arith.constant 1.000000e+00 : f32
    %35 = vector.broadcast %cst_16 : f32 to vector<2x32xf32>
    %36 = arith.addf %35, %34 : vector<2x32xf32>
    %37 = arith.divf %35, %36 : vector<2x32xf32>
    %38 = arith.mulf %29, %13 : vector<2x32xf32>
    %39 = arith.mulf %23, %31 : vector<2x32xf32>
    %40 = arith.addf %38, %39 : vector<2x32xf32>
    %41 = math.tanh %40 : vector<2x32xf32>
    %42 = arith.mulf %37, %41 : vector<2x32xf32>
    %c0_17 = arith.constant 0 : index
    %c0_18 = arith.constant 0 : index
    %c0_19 = arith.constant 0 : index
    %43 = vector.load %arg6[%c0_17, %c0_18, %c0_19] : memref<8x2x32xf32, #tpu.memory_space<vmem>>, vector<1x2x32xf32>
    %44 = vector.shape_cast %43 : vector<1x2x32xf32> to vector<2x32xf32>
    %45 = vector.shape_cast %42 : vector<2x32xf32> to vector<1x2x32xf32>
    tpu.vector_store %arg6[%c0_17, %c0_18, %c0_19], %45 {strides = array<i32>} : memref<8x2x32xf32, #tpu.memory_space<vmem>>, vector<1x2x32xf32>,
    %46 = vector.extract_strided_slice %10 {offsets = [2, 0], sizes = [2, 128], strides = [1, 1]} : vector<16x128xf32> to vector<2x128xf32>
    %47 = arith.truncf %42 : vector<2x32xf32> to vector<2x32xbf16>
    %cst_20 = arith.constant dense<0.000000e+00> : vector<2x128xf32>
    %48 = tpu.matmul %47, %11, %cst_20 {dimension_numbers = #tpu.dot_dimension_numbers<[1], [0], [0], [1], [0, 0, 1, 1], [], []>} : vector<2x32xbf16>, vector<32x128xbf16>, vector<2x128xf32> -> vector<2x128xf32>
    %49 = arith.addf %46, %48 : vector<2x128xf32>
    %50 = vector.extract_strided_slice %49 {offsets = [0, 0], sizes = [2, 32], strides = [1, 1]} : vector<2x128xf32> to vector<2x32xf32>
    %51 = arith.negf %50 : vector<2x32xf32>
    %52 = math.exp %51 : vector<2x32xf32>
    %cst_21 = arith.constant 1.000000e+00 : f32
    %53 = vector.broadcast %cst_21 : f32 to vector<2x32xf32>
    %54 = arith.addf %53, %52 : vector<2x32xf32>
    %55 = arith.divf %53, %54 : vector<2x32xf32>
    %56 = vector.extract_strided_slice %49 {offsets = [0, 32], sizes = [2, 32], strides = [1, 1]} : vector<2x128xf32> to vector<2x32xf32>
    %57 = arith.negf %56 : vector<2x32xf32>
    %58 = math.exp %57 : vector<2x32xf32>
    %cst_22 = arith.constant 1.000000e+00 : f32
    %59 = vector.broadcast %cst_22 : f32 to vector<2x32xf32>
    %60 = arith.addf %59, %58 : vector<2x32xf32>
    %61 = arith.divf %59, %60 : vector<2x32xf32>
    %62 = vector.extract_strided_slice %49 {offsets = [0, 64], sizes = [2, 32], strides = [1, 1]} : vector<2x128xf32> to vector<2x32xf32>
    %63 = math.tanh %62 : vector<2x32xf32>
    %64 = vector.extract_strided_slice %49 {offsets = [0, 96], sizes = [2, 32], strides = [1, 1]} : vector<2x128xf32> to vector<2x32xf32>
    %65 = arith.negf %64 : vector<2x32xf32>
    %66 = math.exp %65 : vector<2x32xf32>
    %cst_23 = arith.constant 1.000000e+00 : f32
    %67 = vector.broadcast %cst_23 : f32 to vector<2x32xf32>
    %68 = arith.addf %67, %66 : vector<2x32xf32>
    %69 = arith.divf %67, %68 : vector<2x32xf32>
    %70 = arith.mulf %61, %40 : vector<2x32xf32>
    %71 = arith.mulf %55, %63 : vector<2x32xf32>
    %72 = arith.addf %70, %71 : vector<2x32xf32>
    %73 = math.tanh %72 : vector<2x32xf32>
    %74 = arith.mulf %69, %73 : vector<2x32xf32>
    %c1 = arith.constant 1 : index
    %c0_24 = arith.constant 0 : index
    %c0_25 = arith.constant 0 : index
    %75 = vector.load %arg6[%c1, %c0_24, %c0_25] : memref<8x2x32xf32, #tpu.memory_space<vmem>>, vector<1x2x32xf32>
    %76 = vector.shape_cast %75 : vector<1x2x32xf32> to vector<2x32xf32>
    %77 = vector.shape_cast %74 : vector<2x32xf32> to vector<1x2x32xf32>
    tpu.vector_store %arg6[%c1, %c0_24, %c0_25], %77 {strides = array<i32>} : memref<8x2x32xf32, #tpu.memory_space<vmem>>, vector<1x2x32xf32>,
    %78 = vector.extract_strided_slice %10 {offsets = [4, 0], sizes = [2, 128], strides = [1, 1]} : vector<16x128xf32> to vector<2x128xf32>
    %79 = arith.truncf %74 : vector<2x32xf32> to vector<2x32xbf16>
    %cst_26 = arith.constant dense<0.000000e+00> : vector<2x128xf32>
    %80 = tpu.matmul %79, %11, %cst_26 {dimension_numbers = #tpu.dot_dimension_numbers<[1], [0], [0], [1], [0, 0, 1, 1], [], []>} : vector<2x32xbf16>, vector<32x128xbf16>, vector<2x128xf32> -> vector<2x128xf32>
    %81 = arith.addf %78, %80 : vector<2x128xf32>
    %82 = vector.extract_strided_slice %81 {offsets = [0, 0], sizes = [2, 32], strides = [1, 1]} : vector<2x128xf32> to vector<2x32xf32>
    %83 = arith.negf %82 : vector<2x32xf32>
    %84 = math.exp %83 : vector<2x32xf32>
    %cst_27 = arith.constant 1.000000e+00 : f32
    %85 = vector.broadcast %cst_27 : f32 to vector<2x32xf32>
    %86 = arith.addf %85, %84 : vector<2x32xf32>
    %87 = arith.divf %85, %86 : vector<2x32xf32>
    %88 = vector.extract_strided_slice %81 {offsets = [0, 32], sizes = [2, 32], strides = [1, 1]} : vector<2x128xf32> to vector<2x32xf32>
    %89 = arith.negf %88 : vector<2x32xf32>
    %90 = math.exp %89 : vector<2x32xf32>
    %cst_28 = arith.constant 1.000000e+00 : f32
    %91 = vector.broadcast %cst_28 : f32 to vector<2x32xf32>
    %92 = arith.addf %91, %90 : vector<2x32xf32>
    %93 = arith.divf %91, %92 : vector<2x32xf32>
    %94 = vector.extract_strided_slice %81 {offsets = [0, 64], sizes = [2, 32], strides = [1, 1]} : vector<2x128xf32> to vector<2x32xf32>
    %95 = math.tanh %94 : vector<2x32xf32>
    %96 = vector.extract_strided_slice %81 {offsets = [0, 96], sizes = [2, 32], strides = [1, 1]} : vector<2x128xf32> to vector<2x32xf32>
    %97 = arith.negf %96 : vector<2x32xf32>
    %98 = math.exp %97 : vector<2x32xf32>
    %cst_29 = arith.constant 1.000000e+00 : f32
    %99 = vector.broadcast %cst_29 : f32 to vector<2x32xf32>
    %100 = arith.addf %99, %98 : vector<2x32xf32>
    %101 = arith.divf %99, %100 : vector<2x32xf32>
    %102 = arith.mulf %93, %72 : vector<2x32xf32>
    %103 = arith.mulf %87, %95 : vector<2x32xf32>
    %104 = arith.addf %102, %103 : vector<2x32xf32>
    %105 = math.tanh %104 : vector<2x32xf32>
    %106 = arith.mulf %101, %105 : vector<2x32xf32>
    %c2 = arith.constant 2 : index
    %c0_30 = arith.constant 0 : index
    %c0_31 = arith.constant 0 : index
    %107 = vector.load %arg6[%c2, %c0_30, %c0_31] : memref<8x2x32xf32, #tpu.memory_space<vmem>>, vector<1x2x32xf32>
    %108 = vector.shape_cast %107 : vector<1x2x32xf32> to vector<2x32xf32>
    %109 = vector.shape_cast %106 : vector<2x32xf32> to vector<1x2x32xf32>
    tpu.vector_store %arg6[%c2, %c0_30, %c0_31], %109 {strides = array<i32>} : memref<8x2x32xf32, #tpu.memory_space<vmem>>, vector<1x2x32xf32>,
    %110 = vector.extract_strided_slice %10 {offsets = [6, 0], sizes = [2, 128], strides = [1, 1]} : vector<16x128xf32> to vector<2x128xf32>
    %111 = arith.truncf %106 : vector<2x32xf32> to vector<2x32xbf16>
    %cst_32 = arith.constant dense<0.000000e+00> : vector<2x128xf32>
    %112 = tpu.matmul %111, %11, %cst_32 {dimension_numbers = #tpu.dot_dimension_numbers<[1], [0], [0], [1], [0, 0, 1, 1], [], []>} : vector<2x32xbf16>, vector<32x128xbf16>, vector<2x128xf32> -> vector<2x128xf32>
    %113 = arith.addf %110, %112 : vector<2x128xf32>
    %114 = vector.extract_strided_slice %113 {offsets = [0, 0], sizes = [2, 32], strides = [1, 1]} : vector<2x128xf32> to vector<2x32xf32>
    %115 = arith.negf %114 : vector<2x32xf32>
    %116 = math.exp %115 : vector<2x32xf32>
    %cst_33 = arith.constant 1.000000e+00 : f32
    %117 = vector.broadcast %cst_33 : f32 to vector<2x32xf32>
    %118 = arith.addf %117, %116 : vector<2x32xf32>
    %119 = arith.divf %117, %118 : vector<2x32xf32>
    %120 = vector.extract_strided_slice %113 {offsets = [0, 32], sizes = [2, 32], strides = [1, 1]} : vector<2x128xf32> to vector<2x32xf32>
    %121 = arith.negf %120 : vector<2x32xf32>
    %122 = math.exp %121 : vector<2x32xf32>
    %cst_34 = arith.constant 1.000000e+00 : f32
    %123 = vector.broadcast %cst_34 : f32 to vector<2x32xf32>
    %124 = arith.addf %123, %122 : vector<2x32xf32>
    %125 = arith.divf %123, %124 : vector<2x32xf32>
    %126 = vector.extract_strided_slice %113 {offsets = [0, 64], sizes = [2, 32], strides = [1, 1]} : vector<2x128xf32> to vector<2x32xf32>
    %127 = math.tanh %126 : vector<2x32xf32>
    %128 = vector.extract_strided_slice %113 {offsets = [0, 96], sizes = [2, 32], strides = [1, 1]} : vector<2x128xf32> to vector<2x32xf32>
    %129 = arith.negf %128 : vector<2x32xf32>
    %130 = math.exp %129 : vector<2x32xf32>
    %cst_35 = arith.constant 1.000000e+00 : f32
    %131 = vector.broadcast %cst_35 : f32 to vector<2x32xf32>
    %132 = arith.addf %131, %130 : vector<2x32xf32>
    %133 = arith.divf %131, %132 : vector<2x32xf32>
    %134 = arith.mulf %125, %104 : vector<2x32xf32>
    %135 = arith.mulf %119, %127 : vector<2x32xf32>
    %136 = arith.addf %134, %135 : vector<2x32xf32>
    %137 = math.tanh %136 : vector<2x32xf32>
    %138 = arith.mulf %133, %137 : vector<2x32xf32>
    %c3 = arith.constant 3 : index
    %c0_36 = arith.constant 0 : index
    %c0_37 = arith.constant 0 : index
    %139 = vector.load %arg6[%c3, %c0_36, %c0_37] : memref<8x2x32xf32, #tpu.memory_space<vmem>>, vector<1x2x32xf32>
    %140 = vector.shape_cast %139 : vector<1x2x32xf32> to vector<2x32xf32>
    %141 = vector.shape_cast %138 : vector<2x32xf32> to vector<1x2x32xf32>
    tpu.vector_store %arg6[%c3, %c0_36, %c0_37], %141 {strides = array<i32>} : memref<8x2x32xf32, #tpu.memory_space<vmem>>, vector<1x2x32xf32>,
    %142 = vector.extract_strided_slice %10 {offsets = [8, 0], sizes = [2, 128], strides = [1, 1]} : vector<16x128xf32> to vector<2x128xf32>
    %143 = arith.truncf %138 : vector<2x32xf32> to vector<2x32xbf16>
    %cst_38 = arith.constant dense<0.000000e+00> : vector<2x128xf32>
    %144 = tpu.matmul %143, %11, %cst_38 {dimension_numbers = #tpu.dot_dimension_numbers<[1], [0], [0], [1], [0, 0, 1, 1], [], []>} : vector<2x32xbf16>, vector<32x128xbf16>, vector<2x128xf32> -> vector<2x128xf32>
    %145 = arith.addf %142, %144 : vector<2x128xf32>
    %146 = vector.extract_strided_slice %145 {offsets = [0, 0], sizes = [2, 32], strides = [1, 1]} : vector<2x128xf32> to vector<2x32xf32>
    %147 = arith.negf %146 : vector<2x32xf32>
    %148 = math.exp %147 : vector<2x32xf32>
    %cst_39 = arith.constant 1.000000e+00 : f32
    %149 = vector.broadcast %cst_39 : f32 to vector<2x32xf32>
    %150 = arith.addf %149, %148 : vector<2x32xf32>
    %151 = arith.divf %149, %150 : vector<2x32xf32>
    %152 = vector.extract_strided_slice %145 {offsets = [0, 32], sizes = [2, 32], strides = [1, 1]} : vector<2x128xf32> to vector<2x32xf32>
    %153 = arith.negf %152 : vector<2x32xf32>
    %154 = math.exp %153 : vector<2x32xf32>
    %cst_40 = arith.constant 1.000000e+00 : f32
    %155 = vector.broadcast %cst_40 : f32 to vector<2x32xf32>
    %156 = arith.addf %155, %154 : vector<2x32xf32>
    %157 = arith.divf %155, %156 : vector<2x32xf32>
    %158 = vector.extract_strided_slice %145 {offsets = [0, 64], sizes = [2, 32], strides = [1, 1]} : vector<2x128xf32> to vector<2x32xf32>
    %159 = math.tanh %158 : vector<2x32xf32>
    %160 = vector.extract_strided_slice %145 {offsets = [0, 96], sizes = [2, 32], strides = [1, 1]} : vector<2x128xf32> to vector<2x32xf32>
    %161 = arith.negf %160 : vector<2x32xf32>
    %162 = math.exp %161 : vector<2x32xf32>
    %cst_41 = arith.constant 1.000000e+00 : f32
    %163 = vector.broadcast %cst_41 : f32 to vector<2x32xf32>
    %164 = arith.addf %163, %162 : vector<2x32xf32>
    %165 = arith.divf %163, %164 : vector<2x32xf32>
    %166 = arith.mulf %157, %136 : vector<2x32xf32>
    %167 = arith.mulf %151, %159 : vector<2x32xf32>
    %168 = arith.addf %166, %167 : vector<2x32xf32>
    %169 = math.tanh %168 : vector<2x32xf32>
    %170 = arith.mulf %165, %169 : vector<2x32xf32>
    %c4 = arith.constant 4 : index
    %c0_42 = arith.constant 0 : index
    %c0_43 = arith.constant 0 : index
    %171 = vector.load %arg6[%c4, %c0_42, %c0_43] : memref<8x2x32xf32, #tpu.memory_space<vmem>>, vector<1x2x32xf32>
    %172 = vector.shape_cast %171 : vector<1x2x32xf32> to vector<2x32xf32>
    %173 = vector.shape_cast %170 : vector<2x32xf32> to vector<1x2x32xf32>
    tpu.vector_store %arg6[%c4, %c0_42, %c0_43], %173 {strides = array<i32>} : memref<8x2x32xf32, #tpu.memory_space<vmem>>, vector<1x2x32xf32>,
    %174 = vector.extract_strided_slice %10 {offsets = [10, 0], sizes = [2, 128], strides = [1, 1]} : vector<16x128xf32> to vector<2x128xf32>
    %175 = arith.truncf %170 : vector<2x32xf32> to vector<2x32xbf16>
    %cst_44 = arith.constant dense<0.000000e+00> : vector<2x128xf32>
    %176 = tpu.matmul %175, %11, %cst_44 {dimension_numbers = #tpu.dot_dimension_numbers<[1], [0], [0], [1], [0, 0, 1, 1], [], []>} : vector<2x32xbf16>, vector<32x128xbf16>, vector<2x128xf32> -> vector<2x128xf32>
    %177 = arith.addf %174, %176 : vector<2x128xf32>
    %178 = vector.extract_strided_slice %177 {offsets = [0, 0], sizes = [2, 32], strides = [1, 1]} : vector<2x128xf32> to vector<2x32xf32>
    %179 = arith.negf %178 : vector<2x32xf32>
    %180 = math.exp %179 : vector<2x32xf32>
    %cst_45 = arith.constant 1.000000e+00 : f32
    %181 = vector.broadcast %cst_45 : f32 to vector<2x32xf32>
    %182 = arith.addf %181, %180 : vector<2x32xf32>
    %183 = arith.divf %181, %182 : vector<2x32xf32>
    %184 = vector.extract_strided_slice %177 {offsets = [0, 32], sizes = [2, 32], strides = [1, 1]} : vector<2x128xf32> to vector<2x32xf32>
    %185 = arith.negf %184 : vector<2x32xf32>
    %186 = math.exp %185 : vector<2x32xf32>
    %cst_46 = arith.constant 1.000000e+00 : f32
    %187 = vector.broadcast %cst_46 : f32 to vector<2x32xf32>
    %188 = arith.addf %187, %186 : vector<2x32xf32>
    %189 = arith.divf %187, %188 : vector<2x32xf32>
    %190 = vector.extract_strided_slice %177 {offsets = [0, 64], sizes = [2, 32], strides = [1, 1]} : vector<2x128xf32> to vector<2x32xf32>
    %191 = math.tanh %190 : vector<2x32xf32>
    %192 = vector.extract_strided_slice %177 {offsets = [0, 96], sizes = [2, 32], strides = [1, 1]} : vector<2x128xf32> to vector<2x32xf32>
    %193 = arith.negf %192 : vector<2x32xf32>
    %194 = math.exp %193 : vector<2x32xf32>
    %cst_47 = arith.constant 1.000000e+00 : f32
    %195 = vector.broadcast %cst_47 : f32 to vector<2x32xf32>
    %196 = arith.addf %195, %194 : vector<2x32xf32>
    %197 = arith.divf %195, %196 : vector<2x32xf32>
    %198 = arith.mulf %189, %168 : vector<2x32xf32>
    %199 = arith.mulf %183, %191 : vector<2x32xf32>
    %200 = arith.addf %198, %199 : vector<2x32xf32>
    %201 = math.tanh %200 : vector<2x32xf32>
    %202 = arith.mulf %197, %201 : vector<2x32xf32>
    %c5 = arith.constant 5 : index
    %c0_48 = arith.constant 0 : index
    %c0_49 = arith.constant 0 : index
    %203 = vector.load %arg6[%c5, %c0_48, %c0_49] : memref<8x2x32xf32, #tpu.memory_space<vmem>>, vector<1x2x32xf32>
    %204 = vector.shape_cast %203 : vector<1x2x32xf32> to vector<2x32xf32>
    %205 = vector.shape_cast %202 : vector<2x32xf32> to vector<1x2x32xf32>
    tpu.vector_store %arg6[%c5, %c0_48, %c0_49], %205 {strides = array<i32>} : memref<8x2x32xf32, #tpu.memory_space<vmem>>, vector<1x2x32xf32>,
    %206 = vector.extract_strided_slice %10 {offsets = [12, 0], sizes = [2, 128], strides = [1, 1]} : vector<16x128xf32> to vector<2x128xf32>
    %207 = arith.truncf %202 : vector<2x32xf32> to vector<2x32xbf16>
    %cst_50 = arith.constant dense<0.000000e+00> : vector<2x128xf32>
    %208 = tpu.matmul %207, %11, %cst_50 {dimension_numbers = #tpu.dot_dimension_numbers<[1], [0], [0], [1], [0, 0, 1, 1], [], []>} : vector<2x32xbf16>, vector<32x128xbf16>, vector<2x128xf32> -> vector<2x128xf32>
    %209 = arith.addf %206, %208 : vector<2x128xf32>
    %210 = vector.extract_strided_slice %209 {offsets = [0, 0], sizes = [2, 32], strides = [1, 1]} : vector<2x128xf32> to vector<2x32xf32>
    %211 = arith.negf %210 : vector<2x32xf32>
    %212 = math.exp %211 : vector<2x32xf32>
    %cst_51 = arith.constant 1.000000e+00 : f32
    %213 = vector.broadcast %cst_51 : f32 to vector<2x32xf32>
    %214 = arith.addf %213, %212 : vector<2x32xf32>
    %215 = arith.divf %213, %214 : vector<2x32xf32>
    %216 = vector.extract_strided_slice %209 {offsets = [0, 32], sizes = [2, 32], strides = [1, 1]} : vector<2x128xf32> to vector<2x32xf32>
    %217 = arith.negf %216 : vector<2x32xf32>
    %218 = math.exp %217 : vector<2x32xf32>
    %cst_52 = arith.constant 1.000000e+00 : f32
    %219 = vector.broadcast %cst_52 : f32 to vector<2x32xf32>
    %220 = arith.addf %219, %218 : vector<2x32xf32>
    %221 = arith.divf %219, %220 : vector<2x32xf32>
    %222 = vector.extract_strided_slice %209 {offsets = [0, 64], sizes = [2, 32], strides = [1, 1]} : vector<2x128xf32> to vector<2x32xf32>
    %223 = math.tanh %222 : vector<2x32xf32>
    %224 = vector.extract_strided_slice %209 {offsets = [0, 96], sizes = [2, 32], strides = [1, 1]} : vector<2x128xf32> to vector<2x32xf32>
    %225 = arith.negf %224 : vector<2x32xf32>
    %226 = math.exp %225 : vector<2x32xf32>
    %cst_53 = arith.constant 1.000000e+00 : f32
    %227 = vector.broadcast %cst_53 : f32 to vector<2x32xf32>
    %228 = arith.addf %227, %226 : vector<2x32xf32>
    %229 = arith.divf %227, %228 : vector<2x32xf32>
    %230 = arith.mulf %221, %200 : vector<2x32xf32>
    %231 = arith.mulf %215, %223 : vector<2x32xf32>
    %232 = arith.addf %230, %231 : vector<2x32xf32>
    %233 = math.tanh %232 : vector<2x32xf32>
    %234 = arith.mulf %229, %233 : vector<2x32xf32>
    %c6 = arith.constant 6 : index
    %c0_54 = arith.constant 0 : index
    %c0_55 = arith.constant 0 : index
    %235 = vector.load %arg6[%c6, %c0_54, %c0_55] : memref<8x2x32xf32, #tpu.memory_space<vmem>>, vector<1x2x32xf32>
    %236 = vector.shape_cast %235 : vector<1x2x32xf32> to vector<2x32xf32>
    %237 = vector.shape_cast %234 : vector<2x32xf32> to vector<1x2x32xf32>
    tpu.vector_store %arg6[%c6, %c0_54, %c0_55], %237 {strides = array<i32>} : memref<8x2x32xf32, #tpu.memory_space<vmem>>, vector<1x2x32xf32>,
    %238 = vector.extract_strided_slice %10 {offsets = [14, 0], sizes = [2, 128], strides = [1, 1]} : vector<16x128xf32> to vector<2x128xf32>
    %239 = arith.truncf %234 : vector<2x32xf32> to vector<2x32xbf16>
    %cst_56 = arith.constant dense<0.000000e+00> : vector<2x128xf32>
    %240 = tpu.matmul %239, %11, %cst_56 {dimension_numbers = #tpu.dot_dimension_numbers<[1], [0], [0], [1], [0, 0, 1, 1], [], []>} : vector<2x32xbf16>, vector<32x128xbf16>, vector<2x128xf32> -> vector<2x128xf32>
    %241 = arith.addf %238, %240 : vector<2x128xf32>
    %242 = vector.extract_strided_slice %241 {offsets = [0, 0], sizes = [2, 32], strides = [1, 1]} : vector<2x128xf32> to vector<2x32xf32>
    %243 = arith.negf %242 : vector<2x32xf32>
    %244 = math.exp %243 : vector<2x32xf32>
    %cst_57 = arith.constant 1.000000e+00 : f32
    %245 = vector.broadcast %cst_57 : f32 to vector<2x32xf32>
    %246 = arith.addf %245, %244 : vector<2x32xf32>
    %247 = arith.divf %245, %246 : vector<2x32xf32>
    %248 = vector.extract_strided_slice %241 {offsets = [0, 32], sizes = [2, 32], strides = [1, 1]} : vector<2x128xf32> to vector<2x32xf32>
    %249 = arith.negf %248 : vector<2x32xf32>
    %250 = math.exp %249 : vector<2x32xf32>
    %cst_58 = arith.constant 1.000000e+00 : f32
    %251 = vector.broadcast %cst_58 : f32 to vector<2x32xf32>
    %252 = arith.addf %251, %250 : vector<2x32xf32>
    %253 = arith.divf %251, %252 : vector<2x32xf32>
    %254 = vector.extract_strided_slice %241 {offsets = [0, 64], sizes = [2, 32], strides = [1, 1]} : vector<2x128xf32> to vector<2x32xf32>
    %255 = math.tanh %254 : vector<2x32xf32>
    %256 = vector.extract_strided_slice %241 {offsets = [0, 96], sizes = [2, 32], strides = [1, 1]} : vector<2x128xf32> to vector<2x32xf32>
    %257 = arith.negf %256 : vector<2x32xf32>
    %258 = math.exp %257 : vector<2x32xf32>
    %cst_59 = arith.constant 1.000000e+00 : f32
    %259 = vector.broadcast %cst_59 : f32 to vector<2x32xf32>
    %260 = arith.addf %259, %258 : vector<2x32xf32>
    %261 = arith.divf %259, %260 : vector<2x32xf32>
    %262 = arith.mulf %253, %232 : vector<2x32xf32>
    %263 = arith.mulf %247, %255 : vector<2x32xf32>
    %264 = arith.addf %262, %263 : vector<2x32xf32>
    %265 = math.tanh %264 : vector<2x32xf32>
    %266 = arith.mulf %261, %265 : vector<2x32xf32>
    %c7 = arith.constant 7 : index
    %c0_60 = arith.constant 0 : index
    %c0_61 = arith.constant 0 : index
    %267 = vector.load %arg6[%c7, %c0_60, %c0_61] : memref<8x2x32xf32, #tpu.memory_space<vmem>>, vector<1x2x32xf32>
    %268 = vector.shape_cast %267 : vector<1x2x32xf32> to vector<2x32xf32>
    %269 = vector.shape_cast %266 : vector<2x32xf32> to vector<1x2x32xf32>
    tpu.vector_store %arg6[%c7, %c0_60, %c0_61], %269 {strides = array<i32>} : memref<8x2x32xf32, #tpu.memory_space<vmem>>, vector<1x2x32xf32>,
    %c0_62 = arith.constant 0 : index
    %c0_63 = arith.constant 0 : index
    %270 = vector.load %arg8[%c0_62, %c0_63] : memref<2x32xf32, #tpu.memory_space<vmem>>, vector<2x32xf32>
    tpu.vector_store %arg8[%c0_62, %c0_63], %266 {strides = array<i32>} : memref<2x32xf32, #tpu.memory_space<vmem>>, vector<2x32xf32>,
    %c0_64 = arith.constant 0 : index
    %c0_65 = arith.constant 0 : index
    %271 = vector.load %arg9[%c0_64, %c0_65] : memref<2x32xf32, #tpu.memory_space<vmem>>, vector<2x32xf32>
    tpu.vector_store %arg9[%c0_64, %c0_65], %264 {strides = array<i32>} : memref<2x32xf32, #tpu.memory_space<vmem>>, vector<2x32xf32>,
    return
  }
  func.func @transform_0(%arg0: i32) -> (i32, i32, i32) {
    %c0_i32 = arith.constant 0 : i32
    %c0_i32_0 = arith.constant 0 : i32
    %c0_i32_1 = arith.constant 0 : i32
    return %arg0, %c0_i32, %c0_i32_0 : i32, i32, i32
  }
  func.func @transform_1(%arg0: i32) -> (i32, i32) {
    %c0_i32 = arith.constant 0 : i32
    %c0_i32_0 = arith.constant 0 : i32
    %c0_i32_1 = arith.constant 0 : i32
    return %c0_i32, %c0_i32_0 : i32, i32
  }
  func.func @transform_2(%arg0: i32) -> (i32, i32) {
    %c0_i32 = arith.constant 0 : i32
    %c0_i32_0 = arith.constant 0 : i32
    %c0_i32_1 = arith.constant 0 : i32
    return %c0_i32, %c0_i32_0 : i32, i32
  }
  func.func @transform_3(%arg0: i32) -> (i32, i32) {
    %c0_i32 = arith.constant 0 : i32
    %c0_i32_0 = arith.constant 0 : i32
    %c0_i32_1 = arith.constant 0 : i32
    return %c0_i32, %c0_i32_0 : i32, i32
  }
  func.func @transform_4(%arg0: i32) -> (i32, i32) {
    %c0_i32 = arith.constant 0 : i32
    %c0_i32_0 = arith.constant 0 : i32
    %c0_i32_1 = arith.constant 0 : i32
    return %c0_i32, %c0_i32_0 : i32, i32
  }
  func.func @transform_5(%arg0: i32) -> (i32, i32, i32) {
    %c0_i32 = arith.constant 0 : i32
    %c0_i32_0 = arith.constant 0 : i32
    %c0_i32_1 = arith.constant 0 : i32
    return %arg0, %c0_i32, %c0_i32_0 : i32, i32, i32
  }
}

</mosaic_0001>

<llo_original>
// kernel: tpu_custom_call.1
$region0: #{tpu_custom_call.1}
  #allocation0 [shape = 'u32[]', space=smem, size = 0x4, offset = 0x4, fixed_abs, tag = 'smem constant byte address 0x4 - core index']
  #allocation1 [shape = 'u32[72,128]{1,0:T(1,128)}', space=vmem, size = 0x9000, scoped, tag = 'internal scratch']
  #allocation2 [shape = 'bf16[32,128]{1,0:T(8,128)(2,1)}', space=vmem, size = 0x2000, scoped, tag = 'scratch operand']
  #allocation3 [shape = 'f32[2,32]{1,0:T(2,128)}', space=vmem, size = 0x400, scoped, tag = 'scratch operand']
  #allocation4 [shape = 'f32[2,32]{1,0:T(2,128)}', space=vmem, size = 0x400, scoped, tag = 'scratch operand']
  %s0 = inlined_call_operand.hbm [shape: f32[8,2,32], index: 0, kind: input, shape index: {}]
  %s1 = inlined_call_operand.hbm [shape: bf16[32,128], index: 1, kind: input, shape index: {}]
  %s2 = inlined_call_operand.hbm [shape: f32[32,128], index: 2, kind: input, shape index: {}]
  %s3 = inlined_call_operand.hbm [shape: u32[32,128], index: 3, kind: input, shape index: {}]
  %s4 = inlined_call_operand.vmem [shape: f32[1,128], index: 4, kind: input, shape index: {}]
  %s5 = inlined_call_operand.hbm [shape: f32[8,2,32], index: 5, kind: output, shape index: {}]
  %s6 = sld [smem:[#allocation0]]
  $region50: #{tpu_custom_call.1} parent=0
    _
  %s8 = ssub.s32 1, %s6
  %s9 = scalar_select 0, %s8, %s6
  $region1: #{tpu_custom_call.1} parent=0
    #allocation5 [shape = 'u8[8192]{0}', space=vmem, size = 0x2000, scoped, tag = 'input window, operand 0, single buffered']
    #allocation6 [shape = 's32[1]{0}', space=sflag, size = 0x4, scoped, tag = 'scoped memory for tpu_custom_call.1']
    #allocation7 [shape = 's32[1]{0}', space=sflag, size = 0x4, scoped, tag = 'scoped memory for tpu_custom_call.1']
    #allocation8 [shape = 'u8[8192]{0}', space=vmem, size = 0x2000, scoped, tag = 'input window, operand 1, single buffered']
    #allocation9 [shape = 's32[1]{0}', space=sflag, size = 0x4, scoped, tag = 'scoped memory for tpu_custom_call.1']
    #allocation10 [shape = 'u8[16384]{0}', space=vmem, size = 0x4000, scoped, tag = 'input window, operand 2, single buffered']
    #allocation11 [shape = 'u8[16384]{0}', space=vmem, size = 0x4000, scoped, tag = 'input window, operand 3, single buffered']
    #allocation12 [shape = 's32[1]{0}', space=sflag, size = 0x4, scoped, tag = 'scoped memory for tpu_custom_call.1']
    #allocation13 [shape = 'u8[8192]{0}', space=vmem, size = 0x2000, scoped, tag = 'output window, operand 0, single buffered']
    %10 = vsyncpa [#allocation6], 0
    %11 = vsyncpa [#allocation9], 0
    %12 = vsyncpa [#allocation12], 0
    %13 = vsyncpa [#allocation7], 0
    // Predicated region
    $region2: #{tpu_custom_call.1} parent=1 // pred_check
      _
    $region3: #{tpu_custom_call.1} parent=1 // pred_check_branch
      %15 = sbr.rel (0) target = $region5
    $region4: #{tpu_custom_call.1} parent=1 // pred_region
      %17 = vsyncadd [#allocation6], 0
      %s18 = sshll.u32 %s0, 4
      %s19 = int_to_ptr.hbm [resolvable:$true] %s18
      %s20 = sshll.u32 [#allocation5], 4
      %s21 = int_to_ptr.vmem [resolvable:$true] %s20
      %26 = dma.hbm_to_vmem [thread:$0]  %s19, 256, %s21, [#allocation6], 32, 32, 2
    $region5: #{tpu_custom_call.1} parent=1 // pred_fallthru
      _
    // Predicated region
    $region6: #{tpu_custom_call.1} parent=1 // pred_check
      _
    $region7: #{tpu_custom_call.1} parent=1 // pred_check_branch
      %28 = sbr.rel (0) target = $region9
    $region8: #{tpu_custom_call.1} parent=1 // pred_region
      %30 = vsyncadd [#allocation9], 0
      %s31 = sshll.u32 %s1, 4
      %s32 = int_to_ptr.hbm [resolvable:$true] %s31
      %s33 = sshll.u32 [#allocation8], 4
      %s34 = int_to_ptr.vmem [resolvable:$true] %s33
      %39 = dma.hbm_to_vmem [thread:$0]  %s32, 256, %s34, [#allocation9], 64, 64, 4
    $region9: #{tpu_custom_call.1} parent=1 // pred_fallthru
      _
    // Predicated region
    $region10: #{tpu_custom_call.1} parent=1 // pred_check
      _
    $region11: #{tpu_custom_call.1} parent=1 // pred_check_branch
      %41 = sbr.rel (0) target = $region13
    $region12: #{tpu_custom_call.1} parent=1 // pred_region
      %43 = vsyncadd [#allocation9], 0
      %s44 = sshll.u32 %s2, 4
      %s45 = int_to_ptr.hbm [resolvable:$true] %s44
      %s46 = sshll.u32 [#allocation10], 4
      %s47 = int_to_ptr.vmem [resolvable:$true] %s46
      %52 = dma.hbm_to_vmem [thread:$0]  %s45, 512, %s47, [#allocation9], 128, 128, 8
    $region13: #{tpu_custom_call.1} parent=1 // pred_fallthru
      _
    // Predicated region
    $region14: #{tpu_custom_call.1} parent=1 // pred_check
      _
    $region15: #{tpu_custom_call.1} parent=1 // pred_check_branch
      %54 = sbr.rel (0) target = $region17
    $region16: #{tpu_custom_call.1} parent=1 // pred_region
      %56 = vsyncadd [#allocation12], 0
      %s57 = sshll.u32 %s3, 4
      %s58 = int_to_ptr.hbm [resolvable:$true] %s57
      %s59 = sshll.u32 [#allocation11], 4
      %s60 = int_to_ptr.vmem [resolvable:$true] %s59
      %65 = dma.hbm_to_vmem [thread:$0]  %s58, 512, %s60, [#allocation12], 128, 128, 8
    $region17: #{tpu_custom_call.1} parent=1 // pred_fallthru
      _
    // Predicated region
    $region18: #{tpu_custom_call.1} parent=1 // pred_check
      _
    $region19: #{tpu_custom_call.1} parent=1 // pred_check_branch
      %67 = sbr.rel (0) target = $region21
    $region20: #{tpu_custom_call.1} parent=1 // pred_region
      _
    $region21: #{tpu_custom_call.1} parent=1 // pred_fallthru
      _
    // Predicated region
    $region22: #{tpu_custom_call.1} parent=1 // pred_check
      _
    $region23: #{tpu_custom_call.1} parent=1 // pred_check_branch
      %69 = sbr.rel (0) target = $region25
    $region24: #{tpu_custom_call.1} parent=1 // pred_region
      %71 = dma.done [#allocation6], 256
    $region25: #{tpu_custom_call.1} parent=1 // pred_fallthru
      _
    // Predicated region
    $region26: #{tpu_custom_call.1} parent=1 // pred_check
      _
    $region27: #{tpu_custom_call.1} parent=1 // pred_check_branch
      %73 = sbr.rel (0) target = $region29
    $region28: #{tpu_custom_call.1} parent=1 // pred_region
      %75 = dma.done [#allocation9], 256
    $region29: #{tpu_custom_call.1} parent=1 // pred_fallthru
      _
    // Predicated region
    $region30: #{tpu_custom_call.1} parent=1 // pred_check
      _
    $region31: #{tpu_custom_call.1} parent=1 // pred_check_branch
      %77 = sbr.rel (0) target = $region33
    $region32: #{tpu_custom_call.1} parent=1 // pred_region
      %79 = dma.done [#allocation9], 512
    $region33: #{tpu_custom_call.1} parent=1 // pred_fallthru
      _
    // Predicated region
    $region34: #{tpu_custom_call.1} parent=1 // pred_check
      _
    $region35: #{tpu_custom_call.1} parent=1 // pred_check_branch
      %81 = sbr.rel (0) target = $region37
    $region36: #{tpu_custom_call.1} parent=1 // pred_region
      %83 = dma.done [#allocation12], 512
    $region37: #{tpu_custom_call.1} parent=1 // pred_fallthru
      _
    %p85 = scmp.eq.s32.totalorder 0, 0
    // Predicated region
    $region38: #{tpu_custom_call.1} parent=1 // pred_check
      %p86 = pneg %p85
    $region39: #{tpu_custom_call.1} parent=1 // pred_check_branch
      %88 = sbr.rel (%p86) target = $region41
    $region40: #{tpu_custom_call.1} parent=1 // pred_region
      %v89 = vld [vmem:[#allocation10] sm:$0xff]
      %v90 = vld [vmem:[#allocation10 + $0x8] sm:$0xff]
      %v91 = vld [vmem:[#allocation10 + $0x10] sm:$0xff]
      %v92 = vld [vmem:[#allocation10 + $0x18] sm:$0xff]
      %v93 = vpack.c.bf16 %v89, %v89
      %v94 = vpack.c.bf16 %v90, %v90
      %v95 = vpack.c.bf16 %v91, %v91
      %v96 = vpack.c.bf16 %v92, %v92
      %97 = vst [vmem:[#allocation2] sm:$0xf] %v93
      %98 = vst [vmem:[#allocation2 + $0x4] sm:$0xf] %v94
      %99 = vst [vmem:[#allocation2 + $0x8] sm:$0xf] %v95
      %100 = vst [vmem:[#allocation2 + $0xc] sm:$0xf] %v96
      %vm101 = vcmask 254976
      %102 = vst.msk [vmem:[#allocation3] sm:$0x3] %vm101, 0.0
      %103 = vst.msk [vmem:[#allocation4] sm:$0x3] %vm101, 0.0
    $region41: #{tpu_custom_call.1} parent=1 // pred_fallthru
      _
    %v104 = vld [vmem:[#allocation5] sm:$0x3]
    %v105 = vld [vmem:[#allocation5 + $0x2] sm:$0x3]
    %v106 = vld [vmem:[#allocation5 + $0x4] sm:$0x3]
    %v107 = vld [vmem:[#allocation5 + $0x6] sm:$0x3]
    %v108 = vld [vmem:[#allocation5 + $0x8] sm:$0x3]
    %v109 = vld [vmem:[#allocation5 + $0xa] sm:$0x3]
    %v110 = vld [vmem:[#allocation5 + $0xc] sm:$0x3]
    %v111 = vld [vmem:[#allocation5 + $0xe] sm:$0x3]
    %v112 = vpack.c.bf16 %v104, %v104
    %v113 = vpack.c.bf16 %v105, %v105
    %v114 = vpack.c.bf16 %v106, %v106
    %v115 = vpack.c.bf16 %v107, %v107
    %v116 = vpack.c.bf16 %v108, %v108
    %v117 = vpack.c.bf16 %v109, %v109
    %v118 = vpack.c.bf16 %v110, %v110
    %v119 = vpack.c.bf16 %v111, %v111
    %v120 = vld [vmem:[#allocation8] sm:$0xf]
    %v121 = vld [vmem:[#allocation8 + $0x4] sm:$0xf]
    %v122 = vld [vmem:[#allocation8 + $0x8] sm:$0xf]
    %v123 = vld [vmem:[#allocation8 + $0xc] sm:$0xf]
    %v124 = vld [vmem:[%s4] sm:$0x1]
    %v126 = vperm.slane %v124, 0
    %129 = vst [vmem:[#allocation1] ss:$9 sm:$0xff] %v112
    %s131 = scalar_lea.vmem [#allocation1], 1
    %132 = vst [vmem:[%s131] ss:$9 sm:$0xff] %v113
    %s134 = scalar_lea.vmem [#allocation1], 2
    %135 = vst [vmem:[%s134] ss:$9 sm:$0xff] %v114
    %s137 = scalar_lea.vmem [#allocation1], 3
    %138 = vst [vmem:[%s137] ss:$9 sm:$0xff] %v115
    %s140 = scalar_lea.vmem [#allocation1], 4
    %141 = vst [vmem:[%s140] ss:$9 sm:$0xff] %v116
    %s143 = scalar_lea.vmem [#allocation1], 5
    %144 = vst [vmem:[%s143] ss:$9 sm:$0xff] %v117
    %s146 = scalar_lea.vmem [#allocation1], 6
    %147 = vst [vmem:[%s146] ss:$9 sm:$0xff] %v118
    %s149 = scalar_lea.vmem [#allocation1], 7
    %150 = vst [vmem:[%s149] ss:$9 sm:$0xff] %v119
    %v151 = vld [vmem:[#allocation1] sm:$0xff]
    %v156 = vunpack.c.l.b16 %v120
    %v157 = vunpack.c.l.b16 %v121
    %v158 = vunpack.c.l.b16 %v122
    %v159 = vunpack.c.l.b16 %v123
    %v160 = vpack.c.b16 %v157, %v156
    %v161 = vpack.c.b16 %v159, %v158
    %vm164 = vcmask 261120
    %v165 = vsel %vm164, %v151, 0
    %167 = vmatpush.bf16.msra.mxu0 0
    %168 = vmatpush.bf16.msra.mxu0 0
    %169 = vmatpush.bf16.msra.mxu0 0
    %170 = vmatpush.bf16.msra.mxu0 0
    %171 = vmatpush.bf16.msra.mxu0 0
    %172 = vmatpush.bf16.msra.mxu0 0
    %173 = vmatpush.bf16.msra.mxu0 %v161
    %174 = vmatpush.bf16.msra.mxu0 %v160
    %175 = vmatmul.bf16.gmra.mxu0 %v165
    %v176 = vpop.f32.mrf.mxu0
    %v177 = vadd.f32 %v126, %v176
    %v178 = vpop.f32.mrf.mxu0
    %v179 = vadd.f32 %v126, %v178
    %180 = vdwg.mxu0
    %v181 = vld [vmem:[#allocation2] sm:$0xf]
    %v182 = vld [vmem:[#allocation2 + $0x4] sm:$0xf]
    %v183 = vld [vmem:[#allocation2 + $0x8] sm:$0xf]
    %v184 = vld [vmem:[#allocation2 + $0xc] sm:$0xf]
    %v185 = vld [vmem:[#allocation3] sm:$0x3]
    %v186 = vld [vmem:[#allocation4] sm:$0x3]
    %v187 = vpack.c.bf16 %v185, %v185
    %v192 = vunpack.c.l.b16 %v181
    %v193 = vunpack.c.l.b16 %v182
    %v194 = vunpack.c.l.b16 %v183
    %v195 = vunpack.c.l.b16 %v184
    %v196 = vpack.c.b16 %v193, %v192
    %v197 = vpack.c.b16 %v195, %v194
    %v201 = vsel %vm164, %v187, 0
    %203 = vmatpush.bf16.msra.mxu0 0
    %204 = vmatpush.bf16.msra.mxu0 0
    %205 = vmatpush.bf16.msra.mxu0 0
    %206 = vmatpush.bf16.msra.mxu0 0
    %207 = vmatpush.bf16.msra.mxu0 0
    %208 = vmatpush.bf16.msra.mxu0 0
    %209 = vmatpush.bf16.msra.mxu0 %v197
    %210 = vmatpush.bf16.msra.mxu0 %v196
    %211 = vmatmul.bf16.gmra.mxu0 %v201
    %v212 = vpop.f32.mrf.mxu0
    %v213 = vadd.f32 0.0, %v212
    %v214 = vpop.f32.mrf.mxu0
    %215 = vdwg.mxu0
    %v216 = vadd.f32 %v177, %v213
    %v217 = vxor.u32 %v216, 2147483648
    %v218 = vmul.f32 %v217, 1.442695
    %v219 = vpow.pop %v218
    %v220 = vadd.f32 %v219, 1.0
    %v221 = vrcp.pop %v220
    %v222 = vmul.f32 %v220, %v221
    %v223 = vsub.f32 1.0, %v222
    %v224 = vmul.f32 %v221, %v223
    %v225 = vadd.f32 %v221, %v224
    %vm226 = vweird.f32 %v220
    %vm227 = vweird.f32 %v221
    %vm228 = vmor %vm226, %vm227
    %v229 = vsel %vm228, %v221, %v225
    %v230 = vand.u32 2147483647, %v220
    %vm231 = vcmp.eq.f32.partialorder %v230, 8.507059e+37
    %v232 = vand.u32 %v220, 2147483648
    %v233 = vor.u32 1.1754944e-38, %v232
    %v234 = vsel %vm231, %v233, %v229
    %v235 = vmul.f32 1.0, %v234
    %v236 = vtanh.pop %v216
    %238 = vrot.lane.b32.xlu0 %v186, 32
    %v239 = vpop.permute.xlu0 %238
    %v241 = vmul.f32 %v235, %v239
    %243 = vrot.lane.b32.xlu0 %v236, 64
    %v244 = vpop.permute.xlu0 %243
    %v246 = vmul.f32 %v235, %v244
    %248 = vrot.lane.b32.xlu0 %v246, 32
    %v249 = vpop.permute.xlu0 %248
    %v251 = vadd.f32 %v241, %v249
    %v252 = vtanh.pop %v251
    %254 = vrot.lane.b32.xlu0 %v252, 64
    %v255 = vpop.permute.xlu0 %254
    %v257 = vmul.f32 %v235, %v255
    %259 = vrot.lane.b32.xlu0 %v257, 32
    %v260 = vpop.permute.xlu0 %259
    %vm262 = vcmask 254976
    %263 = vst.msk [vmem:[#allocation13] sm:$0x3] %vm262, %v260
    %v264 = vpack.c.bf16 %v257, %v257
    %266 = vrot.lane.b32.xlu0 %v264, 32
    %v267 = vpop.permute.xlu0 %266
    %v269 = vsel %vm164, %v267, 0
    %271 = vmatpush.bf16.msra.mxu0 0
    %272 = vmatpush.bf16.msra.mxu0 0
    %273 = vmatpush.bf16.msra.mxu0 0
    %274 = vmatpush.bf16.msra.mxu0 0
    %275 = vmatpush.bf16.msra.mxu0 0
    %276 = vmatpush.bf16.msra.mxu0 0
    %277 = vmatpush.bf16.msra.mxu0 %v197
    %278 = vmatpush.bf16.msra.mxu0 %v196
    %279 = vmatmul.bf16.gmra.mxu0 %v269
    %v280 = vpop.f32.mrf.mxu0
    %v281 = vadd.f32 0.0, %v280
    %v282 = vpop.f32.mrf.mxu0
    %283 = vdwg.mxu0
    %v285 = vrot.slane %v281, 6
    %v287 = vadd.f32 %v177, %v285
    %v288 = vxor.u32 %v287, 2147483648
    %v289 = vmul.f32 %v288, 1.442695
    %v290 = vpow.pop %v289
    %v291 = vadd.f32 %v290, 1.0
    %v292 = vrcp.pop %v291
    %v293 = vmul.f32 %v291, %v292
    %v294 = vsub.f32 1.0, %v293
    %v295 = vmul.f32 %v292, %v294
    %v296 = vadd.f32 %v292, %v295
    %vm297 = vweird.f32 %v291
    %vm298 = vweird.f32 %v292
    %vm299 = vmor %vm297, %vm298
    %v300 = vsel %vm299, %v292, %v296
    %v301 = vand.u32 2147483647, %v291
    %vm302 = vcmp.eq.f32.partialorder %v301, 8.507059e+37
    %v303 = vand.u32 %v291, 2147483648
    %v304 = vor.u32 1.1754944e-38, %v303
    %v305 = vsel %vm302, %v304, %v300
    %v306 = vmul.f32 1.0, %v305
    %v307 = vtanh.pop %v287
    %v309 = vrot.slane %v251, 6
    %v311 = vmul.f32 %v306, %v309
    %313 = vrot.lane.b32.xlu0 %v307, 64
    %v314 = vpop.permute.xlu0 %313
    %v316 = vmul.f32 %v306, %v314
    %318 = vrot.lane.b32.xlu0 %v316, 32
    %v319 = vpop.permute.xlu0 %318
    %v321 = vadd.f32 %v311, %v319
    %v322 = vtanh.pop %v321
    %324 = vrot.lane.b32.xlu0 %v322, 64
    %v325 = vpop.permute.xlu0 %324
    %v327 = vmul.f32 %v306, %v325
    %329 = vrot.lane.b32.xlu0 %v327, 32
    %v330 = vpop.permute.xlu0 %329
    %s332 = scalar_lea.vmem [#allocation13], 2
    %vm333 = vcmask 257026
    %334 = vst.msk [vmem:[%s332 - $0x2] sm:$0xc] %vm333, %v330
    %v335 = vpack.c.bf16 %v327, %v327
    %v337 = vrot.slane %v335, 1
    %338 = vrot.lane.b32.xlu0 %v337, 32
    %v339 = vpop.permute.xlu0 %338
    %v341 = vsel %vm164, %v339, 0
    %343 = vmatpush.bf16.msra.mxu0 0
    %344 = vmatpush.bf16.msra.mxu0 0
    %345 = vmatpush.bf16.msra.mxu0 0
    %346 = vmatpush.bf16.msra.mxu0 0
    %347 = vmatpush.bf16.msra.mxu0 0
    %348 = vmatpush.bf16.msra.mxu0 0
    %349 = vmatpush.bf16.msra.mxu0 %v197
    %350 = vmatpush.bf16.msra.mxu0 %v196
    %351 = vmatmul.bf16.gmra.mxu0 %v341
    %v352 = vpop.f32.mrf.mxu0
    %v353 = vadd.f32 0.0, %v352
    %v354 = vpop.f32.mrf.mxu0
    %355 = vdwg.mxu0
    %v357 = vrot.slane %v353, 4
    %v359 = vadd.f32 %v177, %v357
    %v360 = vxor.u32 %v359, 2147483648
    %v361 = vmul.f32 %v360, 1.442695
    %v362 = vpow.pop %v361
    %v363 = vadd.f32 %v362, 1.0
    %v364 = vrcp.pop %v363
    %v365 = vmul.f32 %v363, %v364
    %v366 = vsub.f32 1.0, %v365
    %v367 = vmul.f32 %v364, %v366
    %v368 = vadd.f32 %v364, %v367
    %vm369 = vweird.f32 %v363
    %vm370 = vweird.f32 %v364
    %vm371 = vmor %vm369, %vm370
    %v372 = vsel %vm371, %v364, %v368
    %v373 = vand.u32 2147483647, %v363
    %vm374 = vcmp.eq.f32.partialorder %v373, 8.507059e+37
    %v375 = vand.u32 %v363, 2147483648
    %v376 = vor.u32 1.1754944e-38, %v375
    %v377 = vsel %vm374, %v376, %v372
    %v378 = vmul.f32 1.0, %v377
    %v379 = vtanh.pop %v359
    %v381 = vrot.slane %v321, 6
    %v383 = vmul.f32 %v378, %v381
    %385 = vrot.lane.b32.xlu0 %v379, 64
    %v386 = vpop.permute.xlu0 %385
    %v388 = vmul.f32 %v378, %v386
    %390 = vrot.lane.b32.xlu0 %v388, 32
    %v391 = vpop.permute.xlu0 %390
    %v393 = vadd.f32 %v383, %v391
    %v394 = vtanh.pop %v393
    %396 = vrot.lane.b32.xlu0 %v394, 64
    %v397 = vpop.permute.xlu0 %396
    %v399 = vmul.f32 %v378, %v397
    %401 = vrot.lane.b32.xlu0 %v399, 32
    %v402 = vpop.permute.xlu0 %401
    %s404 = scalar_lea.vmem [#allocation13], 4
    %vm405 = vcmask 259076
    %406 = vst.msk [vmem:[%s404 - $0x4] sm:$0x30] %vm405, %v402
    %v407 = vpack.c.bf16 %v399, %v399
    %v409 = vrot.slane %v407, 2
    %410 = vrot.lane.b32.xlu0 %v409, 32
    %v411 = vpop.permute.xlu0 %410
    %v413 = vsel %vm164, %v411, 0
    %415 = vmatpush.bf16.msra.mxu0 0
    %416 = vmatpush.bf16.msra.mxu0 0
    %417 = vmatpush.bf16.msra.mxu0 0
    %418 = vmatpush.bf16.msra.mxu0 0
    %419 = vmatpush.bf16.msra.mxu0 0
    %420 = vmatpush.bf16.msra.mxu0 0
    %421 = vmatpush.bf16.msra.mxu0 %v197
    %422 = vmatpush.bf16.msra.mxu0 %v196
    %423 = vmatmul.bf16.gmra.mxu0 %v413
    %v424 = vpop.f32.mrf.mxu0
    %v425 = vadd.f32 0.0, %v424
    %v426 = vpop.f32.mrf.mxu0
    %427 = vdwg.mxu0
    %v429 = vrot.slane %v425, 2
    %v431 = vadd.f32 %v177, %v429
    %v432 = vxor.u32 %v431, 2147483648
    %v433 = vmul.f32 %v432, 1.442695
    %v434 = vpow.pop %v433
    %v435 = vadd.f32 %v434, 1.0
    %v436 = vrcp.pop %v435
    %v437 = vmul.f32 %v435, %v436
    %v438 = vsub.f32 1.0, %v437
    %v439 = vmul.f32 %v436, %v438
    %v440 = vadd.f32 %v436, %v439
    %vm441 = vweird.f32 %v435
    %vm442 = vweird.f32 %v436
    %vm443 = vmor %vm441, %vm442
    %v444 = vsel %vm443, %v436, %v440
    %v445 = vand.u32 2147483647, %v435
    %vm446 = vcmp.eq.f32.partialorder %v445, 8.507059e+37
    %v447 = vand.u32 %v435, 2147483648
    %v448 = vor.u32 1.1754944e-38, %v447
    %v449 = vsel %vm446, %v448, %v444
    %v450 = vmul.f32 1.0, %v449
    %v451 = vtanh.pop %v431
    %v453 = vrot.slane %v393, 6
    %v455 = vmul.f32 %v450, %v453
    %457 = vrot.lane.b32.xlu0 %v451, 64
    %v458 = vpop.permute.xlu0 %457
    %v460 = vmul.f32 %v450, %v458
    %462 = vrot.lane.b32.xlu0 %v460, 32
    %v463 = vpop.permute.xlu0 %462
    %v465 = vadd.f32 %v455, %v463
    %v466 = vtanh.pop %v465
    %468 = vrot.lane.b32.xlu0 %v466, 64
    %v469 = vpop.permute.xlu0 %468
    %v471 = vmul.f32 %v450, %v469
    %473 = vrot.lane.b32.xlu0 %v471, 32
    %v474 = vpop.permute.xlu0 %473
    %s476 = scalar_lea.vmem [#allocation13], 6
    %vm477 = vcmask 261126
    %478 = vst.msk [vmem:[%s476 - $0x6] sm:$0xc0] %vm477, %v474
    %v479 = vpack.c.bf16 %v471, %v471
    %v481 = vrot.slane %v479, 3
    %482 = vrot.lane.b32.xlu0 %v481, 32
    %v483 = vpop.permute.xlu0 %482
    %v485 = vsel %vm164, %v483, 0
    %487 = vmatpush.bf16.msra.mxu0 0
    %488 = vmatpush.bf16.msra.mxu0 0
    %489 = vmatpush.bf16.msra.mxu0 0
    %490 = vmatpush.bf16.msra.mxu0 0
    %491 = vmatpush.bf16.msra.mxu0 0
    %492 = vmatpush.bf16.msra.mxu0 0
    %493 = vmatpush.bf16.msra.mxu0 %v197
    %494 = vmatpush.bf16.msra.mxu0 %v196
    %495 = vmatmul.bf16.gmra.mxu0 %v485
    %v496 = vpop.f32.mrf.mxu0
    %v497 = vadd.f32 0.0, %v496
    %v498 = vpop.f32.mrf.mxu0
    %499 = vdwg.mxu0
    %v500 = vadd.f32 %v179, %v497
    %v501 = vxor.u32 %v500, 2147483648
    %v502 = vmul.f32 %v501, 1.442695
    %v503 = vpow.pop %v502
    %v504 = vadd.f32 %v503, 1.0
    %v505 = vrcp.pop %v504
    %v506 = vmul.f32 %v504, %v505
    %v507 = vsub.f32 1.0, %v506
    %v508 = vmul.f32 %v505, %v507
    %v509 = vadd.f32 %v505, %v508
    %vm510 = vweird.f32 %v504
    %vm511 = vweird.f32 %v505
    %vm512 = vmor %vm510, %vm511
    %v513 = vsel %vm512, %v505, %v509
    %v514 = vand.u32 2147483647, %v504
    %vm515 = vcmp.eq.f32.partialorder %v514, 8.507059e+37
    %v516 = vand.u32 %v504, 2147483648
    %v517 = vor.u32 1.1754944e-38, %v516
    %v518 = vsel %vm515, %v517, %v513
    %v519 = vmul.f32 1.0, %v518
    %v520 = vtanh.pop %v500
    %v522 = vrot.slane %v465, 6
    %v524 = vmul.f32 %v519, %v522
    %526 = vrot.lane.b32.xlu0 %v520, 64
    %v527 = vpop.permute.xlu0 %526
    %v529 = vmul.f32 %v519, %v527
    %531 = vrot.lane.b32.xlu0 %v529, 32
    %v532 = vpop.permute.xlu0 %531
    %v534 = vadd.f32 %v524, %v532
    %v535 = vtanh.pop %v534
    %537 = vrot.lane.b32.xlu0 %v535, 64
    %v538 = vpop.permute.xlu0 %537
    %v540 = vmul.f32 %v519, %v538
    %542 = vrot.lane.b32.xlu0 %v540, 32
    %v543 = vpop.permute.xlu0 %542
    %s545 = scalar_lea.vmem [#allocation13], 8
    %546 = vst.msk [vmem:[%s545] sm:$0x3] %vm262, %v543
    %v547 = vpack.c.bf16 %v540, %v540
    %549 = vrot.lane.b32.xlu0 %v547, 32
    %v550 = vpop.permute.xlu0 %549
    %v552 = vsel %vm164, %v550, 0
    %554 = vmatpush.bf16.msra.mxu0 0
    %555 = vmatpush.bf16.msra.mxu0 0
    %556 = vmatpush.bf16.msra.mxu0 0
    %557 = vmatpush.bf16.msra.mxu0 0
    %558 = vmatpush.bf16.msra.mxu0 0
    %559 = vmatpush.bf16.msra.mxu0 0
    %560 = vmatpush.bf16.msra.mxu0 %v197
    %561 = vmatpush.bf16.msra.mxu0 %v196
    %562 = vmatmul.bf16.gmra.mxu0 %v552
    %v563 = vpop.f32.mrf.mxu0
    %v564 = vadd.f32 0.0, %v563
    %v565 = vpop.f32.mrf.mxu0
    %566 = vdwg.mxu0
    %v568 = vrot.slane %v564, 6
    %v570 = vadd.f32 %v179, %v568
    %v571 = vxor.u32 %v570, 2147483648
    %v572 = vmul.f32 %v571, 1.442695
    %v573 = vpow.pop %v572
    %v574 = vadd.f32 %v573, 1.0
    %v575 = vrcp.pop %v574
    %v576 = vmul.f32 %v574, %v575
    %v577 = vsub.f32 1.0, %v576
    %v578 = vmul.f32 %v575, %v577
    %v579 = vadd.f32 %v575, %v578
    %vm580 = vweird.f32 %v574
    %vm581 = vweird.f32 %v575
    %vm582 = vmor %vm580, %vm581
    %v583 = vsel %vm582, %v575, %v579
    %v584 = vand.u32 2147483647, %v574
    %vm585 = vcmp.eq.f32.partialorder %v584, 8.507059e+37
    %v586 = vand.u32 %v574, 2147483648
    %v587 = vor.u32 1.1754944e-38, %v586
    %v588 = vsel %vm585, %v587, %v583
    %v589 = vmul.f32 1.0, %v588
    %v590 = vtanh.pop %v570
    %v592 = vrot.slane %v534, 6
    %v594 = vmul.f32 %v589, %v592
    %596 = vrot.lane.b32.xlu0 %v590, 64
    %v597 = vpop.permute.xlu0 %596
    %v599 = vmul.f32 %v589, %v597
    %601 = vrot.lane.b32.xlu0 %v599, 32
    %v602 = vpop.permute.xlu0 %601
    %v604 = vadd.f32 %v594, %v602
    %v605 = vtanh.pop %v604
    %607 = vrot.lane.b32.xlu0 %v605, 64
    %v608 = vpop.permute.xlu0 %607
    %v610 = vmul.f32 %v589, %v608
    %612 = vrot.lane.b32.xlu0 %v610, 32
    %v613 = vpop.permute.xlu0 %612
    %s615 = scalar_lea.vmem [#allocation13], 10
    %616 = vst.msk [vmem:[%s615 - $0x2] sm:$0xc] %vm333, %v613
    %v617 = vpack.c.bf16 %v610, %v610
    %v619 = vrot.slane %v617, 1
    %620 = vrot.lane.b32.xlu0 %v619, 32
    %v621 = vpop.permute.xlu0 %620
    %v623 = vsel %vm164, %v621, 0
    %625 = vmatpush.bf16.msra.mxu0 0
    %626 = vmatpush.bf16.msra.mxu0 0
    %627 = vmatpush.bf16.msra.mxu0 0
    %628 = vmatpush.bf16.msra.mxu0 0
    %629 = vmatpush.bf16.msra.mxu0 0
    %630 = vmatpush.bf16.msra.mxu0 0
    %631 = vmatpush.bf16.msra.mxu0 %v197
    %632 = vmatpush.bf16.msra.mxu0 %v196
    %633 = vmatmul.bf16.gmra.mxu0 %v623
    %v634 = vpop.f32.mrf.mxu0
    %v635 = vadd.f32 0.0, %v634
    %v636 = vpop.f32.mrf.mxu0
    %637 = vdwg.mxu0
    %v639 = vrot.slane %v635, 4
    %v641 = vadd.f32 %v179, %v639
    %v642 = vxor.u32 %v641, 2147483648
    %v643 = vmul.f32 %v642, 1.442695
    %v644 = vpow.pop %v643
    %v645 = vadd.f32 %v644, 1.0
    %v646 = vrcp.pop %v645
    %v647 = vmul.f32 %v645, %v646
    %v648 = vsub.f32 1.0, %v647
    %v649 = vmul.f32 %v646, %v648
    %v650 = vadd.f32 %v646, %v649
    %vm651 = vweird.f32 %v645
    %vm652 = vweird.f32 %v646
    %vm653 = vmor %vm651, %vm652
    %v654 = vsel %vm653, %v646, %v650
    %v655 = vand.u32 2147483647, %v645
    %vm656 = vcmp.eq.f32.partialorder %v655, 8.507059e+37
    %v657 = vand.u32 %v645, 2147483648
    %v658 = vor.u32 1.1754944e-38, %v657
    %v659 = vsel %vm656, %v658, %v654
    %v660 = vmul.f32 1.0, %v659
    %v661 = vtanh.pop %v641
    %v663 = vrot.slane %v604, 6
    %v665 = vmul.f32 %v660, %v663
    %667 = vrot.lane.b32.xlu0 %v661, 64
    %v668 = vpop.permute.xlu0 %667
    %v670 = vmul.f32 %v660, %v668
    %672 = vrot.lane.b32.xlu0 %v670, 32
    %v673 = vpop.permute.xlu0 %672
    %v675 = vadd.f32 %v665, %v673
    %v676 = vtanh.pop %v675
    %678 = vrot.lane.b32.xlu0 %v676, 64
    %v679 = vpop.permute.xlu0 %678
    %v681 = vmul.f32 %v660, %v679
    %683 = vrot.lane.b32.xlu0 %v681, 32
    %v684 = vpop.permute.xlu0 %683
    %s686 = scalar_lea.vmem [#allocation13], 12
    %687 = vst.msk [vmem:[%s686 - $0x4] sm:$0x30] %vm405, %v684
    %v688 = vpack.c.bf16 %v681, %v681
    %v690 = vrot.slane %v688, 2
    %691 = vrot.lane.b32.xlu0 %v690, 32
    %v692 = vpop.permute.xlu0 %691
    %v694 = vsel %vm164, %v692, 0
    %696 = vmatpush.bf16.msra.mxu0 0
    %697 = vmatpush.bf16.msra.mxu0 0
    %698 = vmatpush.bf16.msra.mxu0 0
    %699 = vmatpush.bf16.msra.mxu0 0
    %700 = vmatpush.bf16.msra.mxu0 0
    %701 = vmatpush.bf16.msra.mxu0 0
    %702 = vmatpush.bf16.msra.mxu0 %v197
    %703 = vmatpush.bf16.msra.mxu0 %v196
    %704 = vmatmul.bf16.gmra.mxu0 %v694
    %v705 = vpop.f32.mrf.mxu0
    %v706 = vadd.f32 0.0, %v705
    %v707 = vpop.f32.mrf.mxu0
    %708 = vdwg.mxu0
    %v710 = vrot.slane %v706, 2
    %v712 = vadd.f32 %v179, %v710
    %v713 = vxor.u32 %v712, 2147483648
    %v714 = vmul.f32 %v713, 1.442695
    %v715 = vpow.pop %v714
    %v716 = vadd.f32 %v715, 1.0
    %v717 = vrcp.pop %v716
    %v718 = vmul.f32 %v716, %v717
    %v719 = vsub.f32 1.0, %v718
    %v720 = vmul.f32 %v717, %v719
    %v721 = vadd.f32 %v717, %v720
    %vm722 = vweird.f32 %v716
    %vm723 = vweird.f32 %v717
    %vm724 = vmor %vm722, %vm723
    %v725 = vsel %vm724, %v717, %v721
    %v726 = vand.u32 2147483647, %v716
    %vm727 = vcmp.eq.f32.partialorder %v726, 8.507059e+37
    %v728 = vand.u32 %v716, 2147483648
    %v729 = vor.u32 1.1754944e-38, %v728
    %v730 = vsel %vm727, %v729, %v725
    %v731 = vmul.f32 1.0, %v730
    %v732 = vtanh.pop %v712
    %v734 = vrot.slane %v675, 6
    %v736 = vmul.f32 %v731, %v734
    %738 = vrot.lane.b32.xlu0 %v732, 64
    %v739 = vpop.permute.xlu0 %738
    %v741 = vmul.f32 %v731, %v739
    %743 = vrot.lane.b32.xlu0 %v741, 32
    %v744 = vpop.permute.xlu0 %743
    %v746 = vadd.f32 %v736, %v744
    %v747 = vtanh.pop %v746
    %749 = vrot.lane.b32.xlu0 %v747, 64
    %v750 = vpop.permute.xlu0 %749
    %v752 = vmul.f32 %v731, %v750
    %754 = vrot.lane.b32.xlu0 %v752, 32
    %v755 = vpop.permute.xlu0 %754
    %s757 = scalar_lea.vmem [#allocation13], 14
    %758 = vst.msk [vmem:[%s757 - $0x6] sm:$0xc0] %vm477, %v755
    %759 = vst.msk [vmem:[#allocation3 - $0x6] sm:$0xc0] %vm477, %v755
    %761 = vrot.lane.b32.xlu0 %v746, 96
    %v762 = vpop.permute.xlu0 %761
    %764 = vst.msk [vmem:[#allocation4 - $0x6] sm:$0xc0] %vm477, %v762
    // Predicated region
    $region42: #{tpu_custom_call.1} parent=1 // pred_check
      _
    $region43: #{tpu_custom_call.1} parent=1 // pred_check_branch
      %766 = sbr.rel (0) target = $region45
    $region44: #{tpu_custom_call.1} parent=1 // pred_region
      %768 = vsyncadd [#allocation7], 0
      %s769 = sshll.u32 [#allocation13], 4
      %s770 = int_to_ptr.vmem [resolvable:$true] %s769
      %s771 = sshll.u32 %s5, 4
      %s772 = int_to_ptr.hbm [resolvable:$true] %s771
      %777 = dma.vmem_to_hbm [thread:$0]  %s770, 256, %s772, [#allocation7], 32, 32, 2
    $region45: #{tpu_custom_call.1} parent=1 // pred_fallthru
      _
    // Predicated region
    $region46: #{tpu_custom_call.1} parent=1 // pred_check
      _
    $region47: #{tpu_custom_call.1} parent=1 // pred_check_branch
      %779 = sbr.rel (0) target = $region49
    $region48: #{tpu_custom_call.1} parent=1 // pred_region
      %781 = dma.done [#allocation7], 256
    $region49: #{tpu_custom_call.1} parent=1 // pred_fallthru
      _
    %782 = vsyncpa [#allocation6], 1
    %783 = vsyncpa [#allocation9], 1
    %784 = vsyncpa [#allocation12], 1
    %785 = vsyncpa [#allocation7], 1

</llo_original>
